<compile_context>
chip_gen: v6e
topology: v6e:2x2x1
jax: 0.10.0
libtpu: 0.0.40
codegen_flags: <defaults>
</compile_context>

<pallas_src>
import functools

import jax
import jax.numpy as jnp
from jax import lax
from jax.experimental import pallas as pl
from jax.experimental.pallas import tpu as pltpu


def _round_up(x, m):
    return (x + m - 1) // m * m


# ------------------------------ kernel bodies ------------------------------ #

def _build_patches(x2d, patches_ref, *, H, W):
    """Pack the 9 shifted/masked taps of a 3x3 same-conv into the bf16 scratch.

    x2d:         [Cp, L] fp32, L = B*H*W, B samples laid side by side on the
                 lane axis; channel rows >= Cin and padded-sample lanes are
                 already zero (done in the wrapper), so every tap store is a
                 full, unmasked Cp-row slab and no scratch zero-fill is needed.
    patches_ref: [9*Cp, L] bf16 VMEM scratch; row t*Cp + c holds tap
                 t = kh*3 + kw of channel c.
    """
    Cp, L = x2d.shape
    HW = H * W

    # Per-sample lane position -> boundary predicates (computed once).
    flat = lax.broadcasted_iota(jnp.int32, (Cp, L), 1)
    pos = (flat & (HW - 1)) if (HW & (HW - 1)) == 0 else (flat % HW)
    col = (pos & (W - 1)) if (W & (W - 1)) == 0 else (pos % W)
    top_ok = pos >= W            # row - 1 exists
    bot_ok = pos < HW - W        # row + 1 exists
    left_ok = col >= 1           # col - 1 exists
    right_ok = col <= W - 2      # col + 1 exists

    for kh in range(3):
        for kw in range(3):
            t = kh * 3 + kw
            d = (kh - 1) * W + (kw - 1)          # flat source offset of the tap
            if d == 0:
                shifted = x2d                     # center tap: no shift, no mask
            else:
                # shifted[p] = x2d[(p + d) mod L]; for every lane the masks
                # keep, p + d stays inside the same sample's lane block, so
                # nothing wraps across sample seams or the block ends.
                shifted = pltpu.roll(x2d, (-d) % L, axis=1)
            conds = []
            if kh == 0:
                conds.append(top_ok)
            elif kh == 2:
                conds.append(bot_ok)
            if kw == 0:
                conds.append(left_ok)
            elif kw == 2:
                conds.append(right_ok)
            if conds:
                valid = conds[0]
                for c in conds[1:]:
                    valid = valid & c
                tap = jnp.where(valid, shifted, 0.0)
            else:
                tap = shifted
            # Full Cp-row, full-lane-width, sublane-aligned (t*Cp multiple of
            # 16) unmasked bf16 store.
            patches_ref[t * Cp:(t + 1) * Cp, :] = tap.astype(jnp.bfloat16)


def _conv3x3_bias_relu(x_ref, w2_ref, b_ref, patches_ref, *, H, W):
    """Shared conv body; returns fp32 features [Cout, L] for B samples."""
    _build_patches(x_ref[...], patches_ref, H=H, W=W)
    conv = jnp.dot(w2_ref[...],                    # [Cout, 9*Cp]  bf16
                   patches_ref[...],               # [9*Cp, L]     bf16 scratch
                   preferred_element_type=jnp.float32)
    return jnp.maximum(conv + b_ref[...], 0.0)     # fp32 bias + ReLU epilogue


def _fused_cls_kernel(x_ref, w2_ref, b_ref, pool_ref, fcw_ref, fcb_ref, o_ref,
                      patches_ref, *, H, W):
    """conv3x3+ReLU -> GAP (MXU) -> FC head (MXU); B samples per grid step."""
    feat = _conv3x3_bias_relu(x_ref, w2_ref, b_ref, patches_ref, H=H, W=W)
    # GAP: one MXU dot against the block-diagonal averaging matrix
    # pool_ref [Bp, L]; contraction over the lane axis of both operands
    # (trans-rhs form) so pooled lands already transposed as [Bp, Cout].
    pooled = lax.dot_general(pool_ref[...], feat,
                             (((1,), (1,)), ((), ())),
                             preferred_element_type=jnp.float32)
    # FC head on the MXU; lane-dense [Bp, Kp] logits block (Kp % 128 == 0).
    o_ref[0] = (jnp.dot(pooled, fcw_ref[...],
                        preferred_element_type=jnp.float32) + fcb_ref[...])


def _feature_kernel(x_ref, w2_ref, b_ref, o_ref, patches_ref, *, H, W, B):
    """conv3x3 + ReLU only (include_top=False); B samples per grid step."""
    feat = _conv3x3_bias_relu(x_ref, w2_ref, b_ref, patches_ref, H=H, W=W)
    HW = H * W
    for b in range(B):   # static loop; lane slices at multiples of HW (>=128)
        o_ref[b] = feat[:, b * HW:(b + 1) * HW]


# ------------------------------ pallas_call wrappers ------------------------ #

def _compiler_params(vmem_bytes_needed):
    # Re-derived per call from the actual buffer sizes; capped at 64 MiB so the
    # request also fits v7x's physical VMEM (v5e/v6e have 128 MiB).
    limit = int(min(64 * 1024 * 1024,
                    max(16 * 1024 * 1024, 2 * vmem_bytes_needed)))
    return pltpu.CompilerParams(
        dimension_semantics=("parallel",),   # batch-of-blocks axis
        vmem_limit_bytes=limit,
    )


def fused_classifier(x_k, w2, b_col, pool_mat, fc_w_p, fc_b_p, *, H, W, B, S):
    """x_k: [Cp, S*B*HW] fp32 (sample-major lanes) -> logits [S, Bp, Kp]."""
    Cp = x_k.shape[0]
    L = B * H * W
    Bp = pool_mat.shape[0]
    Kp = fc_w_p.shape[1]
    kernel = functools.partial(_fused_cls_kernel, H=H, W=W)
    vmem_needed = (2 * Cp * L * 4 + 9 * Cp * L * 2 + 2 * Bp * Kp * 4
                   + int(w2.size) * 2 + int(pool_mat.size) * 4
                   + int(fc_w_p.size) * 4 + (1 << 20))
    return pl.pallas_call(
        kernel,
        out_shape=jax.ShapeDtypeStruct((S, Bp, Kp), jnp.float32),
        grid_spec=pltpu.PrefetchScalarGridSpec(
            num_scalar_prefetch=0,
            grid=(S,),
            in_specs=[
                pl.BlockSpec((Cp, L), lambda s: (0, s)),
                pl.BlockSpec(w2.shape, lambda s: (0, 0)),
                pl.BlockSpec(b_col.shape, lambda s: (0, 0)),
                pl.BlockSpec(pool_mat.shape, lambda s: (0, 0)),
                pl.BlockSpec(fc_w_p.shape, lambda s: (0, 0)),
                pl.BlockSpec(fc_b_p.shape, lambda s: (0, 0)),
            ],
            out_specs=pl.BlockSpec((1, Bp, Kp), lambda s: (s, 0, 0)),
            scratch_shapes=[pltpu.VMEM((9 * Cp, L), jnp.bfloat16)],
        ),
        compiler_params=_compiler_params(vmem_needed),
    )(x_k, w2, b_col, pool_mat, fc_w_p, fc_b_p)


def conv_features(x_k, w2, b_col, *, H, W, B, S):
    """x_k: [Cp, S*B*HW] fp32 -> features [S*B, Cout, HW] fp32 (lane-dense)."""
    Cp = x_k.shape[0]
    HW = H * W
    L = B * HW
    Cout = w2.shape[0]
    kernel = functools.partial(_feature_kernel, H=H, W=W, B=B)
    vmem_needed = (2 * Cp * L * 4 + 9 * Cp * L * 2 + 2 * B * Cout * HW * 4
                   + int(w2.size) * 2 + int(b_col.size) * 4 + (1 << 20))
    return pl.pallas_call(
        kernel,
        out_shape=jax.ShapeDtypeStruct((S * B, Cout, HW), jnp.float32),
        grid_spec=pltpu.PrefetchScalarGridSpec(
            num_scalar_prefetch=0,
            grid=(S,),
            in_specs=[
                pl.BlockSpec((Cp, L), lambda s: (0, s)),
                pl.BlockSpec(w2.shape, lambda s: (0, 0)),
                pl.BlockSpec(b_col.shape, lambda s: (0, 0)),
            ],
            out_specs=pl.BlockSpec((B, Cout, HW), lambda s: (s, 0, 0)),
            scratch_shapes=[pltpu.VMEM((9 * Cp, L), jnp.bfloat16)],
        ),
        compiler_params=_compiler_params(vmem_needed),
    )(x_k, w2, b_col)


# ------------------------------- model wrapper ------------------------------ #

class BaseNetworkPallas:
    """JAX/Pallas equivalent of a concrete `BaseNetwork` subclass.

    `_create_model` builds: Conv2d(Cin->Cmid, 3, padding=1) -> ReLU
    -> AdaptiveAvgPool2d(1) -> Linear(Cmid, num_classes)  (if include_top).
    `forward(batch)` mirrors `self.model(batch)` of the torch module.
    """

    def __init__(self, in_channels=4, mid_channels=8, include_top=True,
                 weights=None, num_classes=1000, block_batch=8, key=None):
        if key is None:
            key = jax.random.PRNGKey(0)
        self.include_top = include_top
        # TODO(synk): pretrained checkpoint loading not implemented; synthetic init only.
        self.weights = weights
        self.num_classes = num_classes
        self.block_batch = block_batch            # max samples per grid step
        self.params = self._create_model(in_channels, mid_channels, key)

    def _create_model(self, cin, cmid, key):
        k1, k2, k3, k4 = jax.random.split(key, 4)
        conv_w = jax.random.normal(k1, (3, 3, cin, cmid), jnp.float32) * 0.1  # HWIO
        conv_b = jax.random.normal(k2, (cmid,), jnp.float32) * 0.01
        fc_w = jax.random.normal(k3, (cmid, self.num_classes), jnp.float32) * 0.1
        fc_b = jax.random.normal(k4, (self.num_classes,), jnp.float32) * 0.01

        # Kernel-ready packing: im2col row (kh*3+kw)*Cp + ci, Cp = Cin rounded
        # up to 16 (bf16 sublane group); padded channel columns are zero.
        cp = _round_up(cin, 16)
        w_taps = conv_w.reshape(9, cin, cmid)
        w_pad = jnp.zeros((9, cp, cmid), jnp.float32).at[:, :cin, :].set(w_taps)
        conv_w2 = jnp.transpose(w_pad.reshape(9 * cp, cmid)).astype(jnp.bfloat16)

        # FC head padded to a lane-dense multiple of 128 classes.
        kp = _round_up(max(self.num_classes, 1), 128)
        fc_w_p = jnp.zeros((cmid, kp), jnp.float32).at[:, :self.num_classes].set(fc_w)
        fc_b_p = jnp.zeros((1, kp), jnp.float32).at[:, :self.num_classes].set(fc_b)

        return dict(
            conv_w=conv_w, conv_b=conv_b, fc_w=fc_w, fc_b=fc_b,
            conv_w2=conv_w2,                               # [cmid, 9*Cp] bf16
            conv_b_col=conv_b.reshape(cmid, 1),            # [cmid, 1]    fp32
            fc_w_p=fc_w_p, fc_b_p=fc_b_p,                  # [cmid,Kp], [1,Kp]
        )

    def forward(self, batch_nchw):
        x = batch_nchw.astype(jnp.float32)
        N, Cin, H, W = x.shape
        HW = H * W
        p = self.params
        Cp = p["conv_w2"].shape[1] // 9

        # Samples per grid step: amortize per-step overhead while keeping the
        # grid at >= 2 steps so v7x's two TensorCores both get work.
        B = 1 if N <= 1 else max(1, min(self.block_batch, N // 2))
        S = -(-N // B)
        N_pad = S * B
        assert (B * HW) % 128 == 0 or S == 1, "B*H*W must be a multiple of 128"

        # Layout plumbing (outside the kernel): channel-major with samples laid
        # side by side on the lane axis; channels zero-padded to Cp sublanes.
        x3 = x.reshape(N, Cin, HW)
        x_p = jnp.zeros((N_pad, Cp, HW), jnp.float32).at[:N, :Cin, :].set(x3)
        x_k = jnp.transpose(x_p, (1, 0, 2)).reshape(Cp, N_pad * HW)

        if self.include_top:
            Bp = _round_up(B, 8)
            samp = jnp.arange(B * HW, dtype=jnp.int32) // HW
            pool_mat = (samp[None, :] == jnp.arange(Bp, dtype=jnp.int32)[:, None]
                        ).astype(jnp.float32) / float(HW)       # [Bp, B*HW]
            out = fused_classifier(x_k, p["conv_w2"], p["conv_b_col"], pool_mat,
                                   p["fc_w_p"], p["fc_b_p"], H=H, W=W, B=B, S=S)
            return out[:, :B, :self.num_classes].reshape(N_pad, self.num_classes)[:N]

        feat = conv_features(x_k, p["conv_w2"], p["conv_b_col"], H=H, W=W, B=B, S=S)
        return feat[:N].reshape(N, -1, H, W)   # NCHW features (free reshape)

    def __call__(self, batch):
        return self.forward(batch)

    def get_gradcam_layer(self):
        raise NotImplementedError("Grad-CAM not implemented for this network")


# ----------------------------------- demo ----------------------------------- #

if __name__ == "__main__":
    key = jax.random.PRNGKey(0)
    kx, kp = jax.random.split(key)

    x = jax.random.normal(kx, (2, 4, 16, 16), jnp.float32)   # NCHW input

    net = BaseNetworkPallas(in_channels=4, mid_channels=8,
                            include_top=True, num_classes=10, key=kp)
    logits = jax.block_until_ready(net(x))
    assert logits.shape == (2, 10), logits.shape

    net_nt = BaseNetworkPallas(in_channels=4, mid_channels=8,
                               include_top=False, num_classes=10, key=kp)
    feat = jax.block_until_ready(net_nt(x))
    assert feat.shape == (2, 8, 16, 16), feat.shape

    # Pure-JAX reference (same bf16 MXU conv operands / fp32 accumulation).
    p = net.params
    xh = jnp.transpose(x, (0, 2, 3, 1))                      # NHWC
    ref_feat = jax.nn.relu(
        jax.lax.conv_general_dilated(
            xh.astype(jnp.bfloat16), p["conv_w"].astype(jnp.bfloat16),
            (1, 1), "SAME", dimension_numbers=("NHWC", "HWIO", "NHWC"),
            preferred_element_type=jnp.float32)
        + p["conv_b"])
    pooled_ref = jnp.mean(ref_feat, axis=(1, 2))             # [N, Cmid]
    ref_logits = jnp.einsum("nc,ck->nk", pooled_ref, p["fc_w"],
                            precision=jax.lax.Precision.HIGHEST) + p["fc_b"]

    err_logits = float(jnp.max(jnp.abs(logits - ref_logits)))
    err_feat = float(jnp.max(jnp.abs(feat - jnp.transpose(ref_feat, (0, 3, 1, 2)))))
    assert err_logits < 2e-3, err_logits
    assert err_feat < 2e-3, err_feat

    print("KERNEL_OK")
</pallas_src>

<mosaic_0001>
module attributes {stable_mosaic.version = 11 : i64} {
  func.func @_fused_cls_kernel(%arg0: i32, %arg1: memref<16x256xf32, #tpu.memory_space<vmem>>, %arg2: memref<8x144xbf16, #tpu.memory_space<vmem>>, %arg3: memref<8x1xf32, #tpu.memory_space<vmem>>, %arg4: memref<8x256xf32, #tpu.memory_space<vmem>>, %arg5: memref<8x128xf32, #tpu.memory_space<vmem>>, %arg6: memref<1x128xf32, #tpu.memory_space<vmem>>, %arg7: memref<1x8x128xf32, #tpu.memory_space<vmem>>, %arg8: memref<144x256xbf16, #tpu.memory_space<vmem>>) attributes {dimension_semantics = [#tpu.dimension_semantics<parallel>], iteration_bounds = array<i64: 2>, scalar_prefetch = 0 : i64, scratch_operands = 1 : i64, tpu.core_type = #tpu.core_type<tc>, window_params = [{transform_indices = @transform_0, window_bounds = array<i64: 16, 256>}, {pipeline_mode = #tpu.pipeline_mode<synchronous>, transform_indices = @transform_1, window_bounds = array<i64: 8, 144>}, {pipeline_mode = #tpu.pipeline_mode<synchronous>, transform_indices = @transform_2, window_bounds = array<i64: 8, 1>}, {pipeline_mode = #tpu.pipeline_mode<synchronous>, transform_indices = @transform_3, window_bounds = array<i64: 8, 256>}, {pipeline_mode = #tpu.pipeline_mode<synchronous>, transform_indices = @transform_4, window_bounds = array<i64: 8, 128>}, {pipeline_mode = #tpu.pipeline_mode<synchronous>, transform_indices = @transform_5, window_bounds = array<i64: 1, 128>}, {transform_indices = @transform_6, window_bounds = array<i64: 1, 8, 128>}]} {
    %c0 = arith.constant 0 : index
    %c0_0 = arith.constant 0 : index
    %0 = vector.load %arg1[%c0, %c0_0] : memref<16x256xf32, #tpu.memory_space<vmem>>, vector<16x256xf32>
    %1 = tpu.iota {dimensions = array<i32: 1>} : vector<16x256xi32>
    %c255_i32 = arith.constant 255 : i32
    %2 = vector.broadcast %c255_i32 : i32 to vector<16x256xi32>
    %3 = arith.andi %1, %2 : vector<16x256xi32>
    %c15_i32 = arith.constant 15 : i32
    %4 = vector.broadcast %c15_i32 : i32 to vector<16x256xi32>
    %5 = arith.andi %3, %4 : vector<16x256xi32>
    %c16_i32 = arith.constant 16 : i32
    %6 = vector.broadcast %c16_i32 : i32 to vector<16x256xi32>
    %7 = arith.cmpi sge, %3, %6 : vector<16x256xi32>
    %c240_i32 = arith.constant 240 : i32
    %8 = vector.broadcast %c240_i32 : i32 to vector<16x256xi32>
    %9 = arith.cmpi slt, %3, %8 : vector<16x256xi32>
    %c1_i32 = arith.constant 1 : i32
    %10 = vector.broadcast %c1_i32 : i32 to vector<16x256xi32>
    %11 = arith.cmpi sge, %5, %10 : vector<16x256xi32>
    %c14_i32 = arith.constant 14 : i32
    %12 = vector.broadcast %c14_i32 : i32 to vector<16x256xi32>
    %13 = arith.cmpi sle, %5, %12 : vector<16x256xi32>
    %c17_i32 = arith.constant 17 : i32
    %14 = tpu.dynamic_rotate %0 by %c17_i32 dim 1 : vector<16x256xf32>, i32 -> vector<16x256xf32>
    %15 = arith.andi %7, %11 : vector<16x256xi1>
    %cst = arith.constant 0.000000e+00 : f32
    %16 = vector.broadcast %cst : f32 to vector<16x256xf32>
    %17 = arith.select %15, %14, %16 : vector<16x256xi1>, vector<16x256xf32>
    %18 = arith.truncf %17 : vector<16x256xf32> to vector<16x256xbf16>
    %c0_1 = arith.constant 0 : index
    %c0_2 = arith.constant 0 : index
    %19 = vector.load %arg8[%c0_1, %c0_2] : memref<144x256xbf16, #tpu.memory_space<vmem>>, vector<16x256xbf16>
    tpu.vector_store %arg8[%c0_1, %c0_2], %18 {strides = array<i32>} : memref<144x256xbf16, #tpu.memory_space<vmem>>, vector<16x256xbf16>,
    %c16_i32_3 = arith.constant 16 : i32
    %20 = tpu.dynamic_rotate %0 by %c16_i32_3 dim 1 : vector<16x256xf32>, i32 -> vector<16x256xf32>
    %cst_4 = arith.constant 0.000000e+00 : f32
    %21 = vector.broadcast %cst_4 : f32 to vector<16x256xf32>
    %22 = arith.select %7, %20, %21 : vector<16x256xi1>, vector<16x256xf32>
    %23 = arith.truncf %22 : vector<16x256xf32> to vector<16x256xbf16>
    %c16 = arith.constant 16 : index
    %c0_5 = arith.constant 0 : index
    %24 = vector.load %arg8[%c16, %c0_5] : memref<144x256xbf16, #tpu.memory_space<vmem>>, vector<16x256xbf16>
    tpu.vector_store %arg8[%c16, %c0_5], %23 {strides = array<i32>} : memref<144x256xbf16, #tpu.memory_space<vmem>>, vector<16x256xbf16>,
    %c15_i32_6 = arith.constant 15 : i32
    %25 = tpu.dynamic_rotate %0 by %c15_i32_6 dim 1 : vector<16x256xf32>, i32 -> vector<16x256xf32>
    %26 = arith.andi %7, %13 : vector<16x256xi1>
    %cst_7 = arith.constant 0.000000e+00 : f32
    %27 = vector.broadcast %cst_7 : f32 to vector<16x256xf32>
    %28 = arith.select %26, %25, %27 : vector<16x256xi1>, vector<16x256xf32>
    %29 = arith.truncf %28 : vector<16x256xf32> to vector<16x256xbf16>
    %c32 = arith.constant 32 : index
    %c0_8 = arith.constant 0 : index
    %30 = vector.load %arg8[%c32, %c0_8] : memref<144x256xbf16, #tpu.memory_space<vmem>>, vector<16x256xbf16>
    tpu.vector_store %arg8[%c32, %c0_8], %29 {strides = array<i32>} : memref<144x256xbf16, #tpu.memory_space<vmem>>, vector<16x256xbf16>,
    %c1_i32_9 = arith.constant 1 : i32
    %31 = tpu.dynamic_rotate %0 by %c1_i32_9 dim 1 : vector<16x256xf32>, i32 -> vector<16x256xf32>
    %cst_10 = arith.constant 0.000000e+00 : f32
    %32 = vector.broadcast %cst_10 : f32 to vector<16x256xf32>
    %33 = arith.select %11, %31, %32 : vector<16x256xi1>, vector<16x256xf32>
    %34 = arith.truncf %33 : vector<16x256xf32> to vector<16x256xbf16>
    %c48 = arith.constant 48 : index
    %c0_11 = arith.constant 0 : index
    %35 = vector.load %arg8[%c48, %c0_11] : memref<144x256xbf16, #tpu.memory_space<vmem>>, vector<16x256xbf16>
    tpu.vector_store %arg8[%c48, %c0_11], %34 {strides = array<i32>} : memref<144x256xbf16, #tpu.memory_space<vmem>>, vector<16x256xbf16>,
    %36 = arith.truncf %0 : vector<16x256xf32> to vector<16x256xbf16>
    %c64 = arith.constant 64 : index
    %c0_12 = arith.constant 0 : index
    %37 = vector.load %arg8[%c64, %c0_12] : memref<144x256xbf16, #tpu.memory_space<vmem>>, vector<16x256xbf16>
    tpu.vector_store %arg8[%c64, %c0_12], %36 {strides = array<i32>} : memref<144x256xbf16, #tpu.memory_space<vmem>>, vector<16x256xbf16>,
    %c255_i32_13 = arith.constant 255 : i32
    %38 = tpu.dynamic_rotate %0 by %c255_i32_13 dim 1 : vector<16x256xf32>, i32 -> vector<16x256xf32>
    %cst_14 = arith.constant 0.000000e+00 : f32
    %39 = vector.broadcast %cst_14 : f32 to vector<16x256xf32>
    %40 = arith.select %13, %38, %39 : vector<16x256xi1>, vector<16x256xf32>
    %41 = arith.truncf %40 : vector<16x256xf32> to vector<16x256xbf16>
    %c80 = arith.constant 80 : index
    %c0_15 = arith.constant 0 : index
    %42 = vector.load %arg8[%c80, %c0_15] : memref<144x256xbf16, #tpu.memory_space<vmem>>, vector<16x256xbf16>
    tpu.vector_store %arg8[%c80, %c0_15], %41 {strides = array<i32>} : memref<144x256xbf16, #tpu.memory_space<vmem>>, vector<16x256xbf16>,
    %c241_i32 = arith.constant 241 : i32
    %43 = tpu.dynamic_rotate %0 by %c241_i32 dim 1 : vector<16x256xf32>, i32 -> vector<16x256xf32>
    %44 = arith.andi %9, %11 : vector<16x256xi1>
    %cst_16 = arith.constant 0.000000e+00 : f32
    %45 = vector.broadcast %cst_16 : f32 to vector<16x256xf32>
    %46 = arith.select %44, %43, %45 : vector<16x256xi1>, vector<16x256xf32>
    %47 = arith.truncf %46 : vector<16x256xf32> to vector<16x256xbf16>
    %c96 = arith.constant 96 : index
    %c0_17 = arith.constant 0 : index
    %48 = vector.load %arg8[%c96, %c0_17] : memref<144x256xbf16, #tpu.memory_space<vmem>>, vector<16x256xbf16>
    tpu.vector_store %arg8[%c96, %c0_17], %47 {strides = array<i32>} : memref<144x256xbf16, #tpu.memory_space<vmem>>, vector<16x256xbf16>,
    %c240_i32_18 = arith.constant 240 : i32
    %49 = tpu.dynamic_rotate %0 by %c240_i32_18 dim 1 : vector<16x256xf32>, i32 -> vector<16x256xf32>
    %cst_19 = arith.constant 0.000000e+00 : f32
    %50 = vector.broadcast %cst_19 : f32 to vector<16x256xf32>
    %51 = arith.select %9, %49, %50 : vector<16x256xi1>, vector<16x256xf32>
    %52 = arith.truncf %51 : vector<16x256xf32> to vector<16x256xbf16>
    %c112 = arith.constant 112 : index
    %c0_20 = arith.constant 0 : index
    %53 = vector.load %arg8[%c112, %c0_20] : memref<144x256xbf16, #tpu.memory_space<vmem>>, vector<16x256xbf16>
    tpu.vector_store %arg8[%c112, %c0_20], %52 {strides = array<i32>} : memref<144x256xbf16, #tpu.memory_space<vmem>>, vector<16x256xbf16>,
    %c239_i32 = arith.constant 239 : i32
    %54 = tpu.dynamic_rotate %0 by %c239_i32 dim 1 : vector<16x256xf32>, i32 -> vector<16x256xf32>
    %55 = arith.andi %9, %13 : vector<16x256xi1>
    %cst_21 = arith.constant 0.000000e+00 : f32
    %56 = vector.broadcast %cst_21 : f32 to vector<16x256xf32>
    %57 = arith.select %55, %54, %56 : vector<16x256xi1>, vector<16x256xf32>
    %58 = arith.truncf %57 : vector<16x256xf32> to vector<16x256xbf16>
    %c128 = arith.constant 128 : index
    %c0_22 = arith.constant 0 : index
    %59 = vector.load %arg8[%c128, %c0_22] : memref<144x256xbf16, #tpu.memory_space<vmem>>, vector<16x256xbf16>
    tpu.vector_store %arg8[%c128, %c0_22], %58 {strides = array<i32>} : memref<144x256xbf16, #tpu.memory_space<vmem>>, vector<16x256xbf16>,
    %c0_23 = arith.constant 0 : index
    %c0_24 = arith.constant 0 : index
    %60 = vector.load %arg2[%c0_23, %c0_24] : memref<8x144xbf16, #tpu.memory_space<vmem>>, vector<8x144xbf16>
    %c0_25 = arith.constant 0 : index
    %c0_26 = arith.constant 0 : index
    %61 = vector.load %arg8[%c0_25, %c0_26] : memref<144x256xbf16, #tpu.memory_space<vmem>>, vector<144x256xbf16>
    %cst_27 = arith.constant dense<0.000000e+00> : vector<8x256xf32>
    %62 = tpu.matmul %60, %61, %cst_27 {dimension_numbers = #tpu.dot_dimension_numbers<[1], [0], [0], [1], [0, 0, 1, 1], [], []>} : vector<8x144xbf16>, vector<144x256xbf16>, vector<8x256xf32> -> vector<8x256xf32>
    %c0_28 = arith.constant 0 : index
    %c0_29 = arith.constant 0 : index
    %63 = vector.load %arg3[%c0_28, %c0_29] : memref<8x1xf32, #tpu.memory_space<vmem>>, vector<8x1xf32>
    %64 = vector.broadcast %63 : vector<8x1xf32> to vector<8x256xf32>
    %65 = arith.addf %62, %64 : vector<8x256xf32>
    %cst_30 = arith.constant 0.000000e+00 : f32
    %66 = vector.broadcast %cst_30 : f32 to vector<8x256xf32>
    %67 = arith.maximumf %65, %66 : vector<8x256xf32>
    %c0_31 = arith.constant 0 : index
    %c0_32 = arith.constant 0 : index
    %68 = vector.load %arg4[%c0_31, %c0_32] : memref<8x256xf32, #tpu.memory_space<vmem>>, vector<8x256xf32>
    %cst_33 = arith.constant dense<0.000000e+00> : vector<8x8xf32>
    %69 = tpu.matmul %68, %67, %cst_33 {dimension_numbers = #tpu.dot_dimension_numbers<[1], [1], [0], [0], [0, 0, 1, 0], [], []>} : vector<8x256xf32>, vector<8x256xf32>, vector<8x8xf32> -> vector<8x8xf32>
    %c0_34 = arith.constant 0 : index
    %c0_35 = arith.constant 0 : index
    %70 = vector.load %arg5[%c0_34, %c0_35] : memref<8x128xf32, #tpu.memory_space<vmem>>, vector<8x128xf32>
    %cst_36 = arith.constant dense<0.000000e+00> : vector<8x128xf32>
    %71 = tpu.matmul %69, %70, %cst_36 {dimension_numbers = #tpu.dot_dimension_numbers<[1], [0], [0], [1], [0, 0, 1, 1], [], []>} : vector<8x8xf32>, vector<8x128xf32>, vector<8x128xf32> -> vector<8x128xf32>
    %c0_37 = arith.constant 0 : index
    %c0_38 = arith.constant 0 : index
    %72 = vector.load %arg6[%c0_37, %c0_38] : memref<1x128xf32, #tpu.memory_space<vmem>>, vector<1x128xf32>
    %73 = vector.broadcast %72 : vector<1x128xf32> to vector<8x128xf32>
    %74 = arith.addf %71, %73 : vector<8x128xf32>
    %c0_39 = arith.constant 0 : index
    %c0_40 = arith.constant 0 : index
    %c0_41 = arith.constant 0 : index
    %75 = vector.load %arg7[%c0_39, %c0_40, %c0_41] : memref<1x8x128xf32, #tpu.memory_space<vmem>>, vector<1x8x128xf32>
    %76 = vector.shape_cast %75 : vector<1x8x128xf32> to vector<8x128xf32>
    %77 = vector.shape_cast %74 : vector<8x128xf32> to vector<1x8x128xf32>
    tpu.vector_store %arg7[%c0_39, %c0_40, %c0_41], %77 {strides = array<i32>} : memref<1x8x128xf32, #tpu.memory_space<vmem>>, vector<1x8x128xf32>,
    return
  }
  func.func @transform_0(%arg0: i32) -> (i32, i32) {
    %c0_i32 = arith.constant 0 : i32
    %c0_i32_0 = arith.constant 0 : i32
    return %c0_i32, %arg0 : i32, i32
  }
  func.func @transform_1(%arg0: i32) -> (i32, i32) {
    %c0_i32 = arith.constant 0 : i32
    %c0_i32_0 = arith.constant 0 : i32
    %c0_i32_1 = arith.constant 0 : i32
    return %c0_i32, %c0_i32_0 : i32, i32
  }
  func.func @transform_2(%arg0: i32) -> (i32, i32) {
    %c0_i32 = arith.constant 0 : i32
    %c0_i32_0 = arith.constant 0 : i32
    %c0_i32_1 = arith.constant 0 : i32
    return %c0_i32, %c0_i32_0 : i32, i32
  }
  func.func @transform_3(%arg0: i32) -> (i32, i32) {
    %c0_i32 = arith.constant 0 : i32
    %c0_i32_0 = arith.constant 0 : i32
    %c0_i32_1 = arith.constant 0 : i32
    return %c0_i32, %c0_i32_0 : i32, i32
  }
  func.func @transform_4(%arg0: i32) -> (i32, i32) {
    %c0_i32 = arith.constant 0 : i32
    %c0_i32_0 = arith.constant 0 : i32
    %c0_i32_1 = arith.constant 0 : i32
    return %c0_i32, %c0_i32_0 : i32, i32
  }
  func.func @transform_5(%arg0: i32) -> (i32, i32) {
    %c0_i32 = arith.constant 0 : i32
    %c0_i32_0 = arith.constant 0 : i32
    %c0_i32_1 = arith.constant 0 : i32
    return %c0_i32, %c0_i32_0 : i32, i32
  }
  func.func @transform_6(%arg0: i32) -> (i32, i32, i32) {
    %c0_i32 = arith.constant 0 : i32
    %c0_i32_0 = arith.constant 0 : i32
    %c0_i32_1 = arith.constant 0 : i32
    return %arg0, %c0_i32, %c0_i32_0 : i32, i32, i32
  }
}

</mosaic_0001>

<llo_original>
// kernel: tpu_custom_call.1
$region0: #{tpu_custom_call.1}
  #allocation0 [shape = 'u32[]', space=smem, size = 0x4, offset = 0x4, fixed_abs, tag = 'smem constant byte address 0x4 - core index']
  #allocation1 [shape = 'u32[144,128]{1,0:T(1,128)}', space=vmem, size = 0x12000, scoped, tag = 'internal scratch']
  #allocation2 [shape = 'bf16[144,256]{1,0:T(8,128)(2,1)}', space=vmem, size = 0x12000, scoped, tag = 'scratch operand']
  %s0 = inlined_call_operand.hbm [shape: f32[16,512], index: 0, kind: input, shape index: {}]
  %s1 = inlined_call_operand.vmem [shape: bf16[8,144], index: 1, kind: input, shape index: {}]
  %s2 = inlined_call_operand.vmem [shape: f32[8,1], index: 2, kind: input, shape index: {}]
  %s3 = inlined_call_operand.hbm [shape: f32[8,256], index: 3, kind: input, shape index: {}]
  %s4 = inlined_call_operand.vmem [shape: f32[8,128], index: 4, kind: input, shape index: {}]
  %s5 = inlined_call_operand.vmem [shape: f32[1,128], index: 5, kind: input, shape index: {}]
  %s6 = inlined_call_operand.hbm [shape: f32[2,8,128], index: 6, kind: output, shape index: {}]
  %s7 = sld [smem:[#allocation0]]
  $region65: #{tpu_custom_call.1} parent=0
    _
  %s9 = ssub.s32 1, %s7
  %s10 = scalar_select 0, %s9, %s7
  $region1: #{tpu_custom_call.1} parent=0
    #allocation3 [shape = 'u8[32768]{0}', space=vmem, size = 0x8000, scoped, tag = 'input window, operand 0']
    #allocation4 [shape = 's32[2]{0}', space=sflag, size = 0x8, scoped, tag = 'scoped memory for tpu_custom_call.1']
    #allocation5 [shape = 's32[2]{0}', space=sflag, size = 0x8, scoped, tag = 'scoped memory for tpu_custom_call.1']
    #allocation6 [shape = 'u8[8192]{0}', space=vmem, size = 0x2000, scoped, tag = 'input window, operand 3, single buffered']
    #allocation7 [shape = 's32[1]{0}', space=sflag, size = 0x4, scoped, tag = 'scoped memory for tpu_custom_call.1']
    #allocation8 [shape = 'u8[8192]{0}', space=vmem, size = 0x2000, scoped, tag = 'output window, operand 0']
    %11 = vsyncpa [#allocation4], 0
    %s12 = scalar_lea.sflag [#allocation4], 1
    %13 = vsyncpa %s12, 0
    %14 = vsyncpa [#allocation7], 0
    %15 = vsyncpa [#allocation5], 0
    %s16 = scalar_lea.sflag [#allocation5], 1
    %17 = vsyncpa %s16, 0
    loop: start=0, step=1, limit=4
    $region2: #{tpu_custom_call.1} parent=1 // loop_pre_header
      _
    $region3: #{tpu_custom_call.1} parent=1 // loop_header
      %s19 = sphi 0, %s23
      %p20 = scmp.ge.s32.totalorder %s19, 4
      %s29 = sphi 0, %s31
      %s32 = sphi 0, %s29
      %s33 = sphi 0, %s32
      %s49 = sphi 0, %s33
      %s53 = sphi 0, %s53
      %s55 = sphi 0, %s53
      %s56 = sphi 0, %s55
      %s70 = sphi 0, %s56
      %s74 = sphi 0, %s74
      %s76 = sphi 0, %s74
      %s77 = sphi 0, %s76
      %s91 = sphi 0, %s77
      %s95 = sphi 0, %s95
      %s97 = sphi 0, %s95
      %s98 = sphi 0, %s97
      %s112 = sphi 0, %s98
      %s116 = sphi 0, %s116
      %s118 = sphi 0, %s116
      %s119 = sphi 0, %s118
      %s133 = sphi 0, %s119
      %s137 = sphi 0, %s137
      %s139 = sphi 0, %s137
      %s140 = sphi 0, %s139
      %s154 = sphi 0, %s140
      %s160 = sphi 0, %s162
      %s163 = sphi 0, %s160
      %s164 = sphi 0, %s163
      %s180 = sphi 0, %s164
    $region4: #{tpu_custom_call.1} parent=1 // loop_header_branch
      %22 = sbr.rel (%p20) target = $region8
    $region5: #{tpu_custom_call.1} parent=1 // loop_body
      %s24 = ssub.s32 %s19, 1
      %s25 = ssub.s32 %s19, 2
      %s26 = sadd.s32 %s19, 1
      %s27 = ssub.s32 %s19, %s26
      %p28 = scmp.eq.s32.totalorder %s27, 0
      %s30 = sadd.s32 %s29, 1
      %s31 = scalar_select %p28, %s29, %s30
      %p34 = pneg %p28
      %p35 = scmp.eq.s32.totalorder %s19, 1
      %p36 = por %p34, %p35
      %p37 = scmp.ne.s32.totalorder %s29, %s32
      %p38 = scmp.eq.s32.totalorder %s19, 0
      %p39 = por %p37, %p38
      %p40 = scmp.ne.s32.totalorder %s29, %s32
      %p41 = scmp.eq.s32.totalorder %s24, 1
      %p42 = por %p40, %p41
      %p43 = scmp.ne.s32.totalorder %s32, %s33
      %p44 = scmp.eq.s32.totalorder %s24, 0
      %p45 = por %p43, %p44
      %p46 = scmp.ne.s32.totalorder %s32, %s33
      %p47 = scmp.eq.s32.totalorder %s25, 1
      %p48 = por %p46, %p47
      %p50 = scmp.ne.s32.totalorder %s33, %s49
      %p51 = scmp.eq.s32.totalorder %s25, 0
      %p52 = por %p50, %p51
      %s54 = sadd.s32 %s53, 1
      %p57 = scmp.eq.s32.totalorder %s19, 1
      %p58 = scmp.ne.s32.totalorder %s53, %s55
      %p59 = scmp.eq.s32.totalorder %s19, 0
      %p60 = por %p58, %p59
      %p61 = scmp.ne.s32.totalorder %s53, %s55
      %p62 = scmp.eq.s32.totalorder %s24, 1
      %p63 = por %p61, %p62
      %p64 = scmp.ne.s32.totalorder %s55, %s56
      %p65 = scmp.eq.s32.totalorder %s24, 0
      %p66 = por %p64, %p65
      %p67 = scmp.ne.s32.totalorder %s55, %s56
      %p68 = scmp.eq.s32.totalorder %s25, 1
      %p69 = por %p67, %p68
      %p71 = scmp.ne.s32.totalorder %s56, %s70
      %p72 = scmp.eq.s32.totalorder %s25, 0
      %p73 = por %p71, %p72
      %s75 = sadd.s32 %s74, 1
      %p78 = scmp.eq.s32.totalorder %s19, 1
      %p79 = scmp.ne.s32.totalorder %s74, %s76
      %p80 = scmp.eq.s32.totalorder %s19, 0
      %p81 = por %p79, %p80
      %p82 = scmp.ne.s32.totalorder %s74, %s76
      %p83 = scmp.eq.s32.totalorder %s24, 1
      %p84 = por %p82, %p83
      %p85 = scmp.ne.s32.totalorder %s76, %s77
      %p86 = scmp.eq.s32.totalorder %s24, 0
      %p87 = por %p85, %p86
      %p88 = scmp.ne.s32.totalorder %s76, %s77
      %p89 = scmp.eq.s32.totalorder %s25, 1
      %p90 = por %p88, %p89
      %p92 = scmp.ne.s32.totalorder %s77, %s91
      %p93 = scmp.eq.s32.totalorder %s25, 0
      %p94 = por %p92, %p93
      %s96 = sadd.s32 %s95, 1
      %p99 = scmp.eq.s32.totalorder %s19, 1
      %p100 = scmp.ne.s32.totalorder %s95, %s97
      %p101 = scmp.eq.s32.totalorder %s19, 0
      %p102 = por %p100, %p101
      %p103 = scmp.ne.s32.totalorder %s95, %s97
      %p104 = scmp.eq.s32.totalorder %s24, 1
      %p105 = por %p103, %p104
      %p106 = scmp.ne.s32.totalorder %s97, %s98
      %p107 = scmp.eq.s32.totalorder %s24, 0
      %p108 = por %p106, %p107
      %p109 = scmp.ne.s32.totalorder %s97, %s98
      %p110 = scmp.eq.s32.totalorder %s25, 1
      %p111 = por %p109, %p110
      %p113 = scmp.ne.s32.totalorder %s98, %s112
      %p114 = scmp.eq.s32.totalorder %s25, 0
      %p115 = por %p113, %p114
      %s117 = sadd.s32 %s116, 1
      %p120 = scmp.eq.s32.totalorder %s19, 1
      %p121 = scmp.ne.s32.totalorder %s116, %s118
      %p122 = scmp.eq.s32.totalorder %s19, 0
      %p123 = por %p121, %p122
      %p124 = scmp.ne.s32.totalorder %s116, %s118
      %p125 = scmp.eq.s32.totalorder %s24, 1
      %p126 = por %p124, %p125
      %p127 = scmp.ne.s32.totalorder %s118, %s119
      %p128 = scmp.eq.s32.totalorder %s24, 0
      %p129 = por %p127, %p128
      %p130 = scmp.ne.s32.totalorder %s118, %s119
      %p131 = scmp.eq.s32.totalorder %s25, 1
      %p132 = por %p130, %p131
      %p134 = scmp.ne.s32.totalorder %s119, %s133
      %p135 = scmp.eq.s32.totalorder %s25, 0
      %p136 = por %p134, %p135
      %s138 = sadd.s32 %s137, 1
      %p141 = scmp.eq.s32.totalorder %s19, 1
      %p142 = scmp.ne.s32.totalorder %s137, %s139
      %p143 = scmp.eq.s32.totalorder %s19, 0
      %p144 = por %p142, %p143
      %p145 = scmp.ne.s32.totalorder %s137, %s139
      %p146 = scmp.eq.s32.totalorder %s24, 1
      %p147 = por %p145, %p146
      %p148 = scmp.ne.s32.totalorder %s139, %s140
      %p149 = scmp.eq.s32.totalorder %s24, 0
      %p150 = por %p148, %p149
      %p151 = scmp.ne.s32.totalorder %s139, %s140
      %p152 = scmp.eq.s32.totalorder %s25, 1
      %p153 = por %p151, %p152
      %p155 = scmp.ne.s32.totalorder %s140, %s154
      %p156 = scmp.eq.s32.totalorder %s25, 0
      %p157 = por %p155, %p156
      %s158 = ssub.s32 %s19, %s26
      %p159 = scmp.eq.s32.totalorder %s158, 0
      %s161 = sadd.s32 %s160, 1
      %s162 = scalar_select %p159, %s160, %s161
      %p165 = pneg %p159
      %p166 = scmp.eq.s32.totalorder %s19, 1
      %p167 = por %p165, %p166
      %p168 = scmp.ne.s32.totalorder %s160, %s163
      %p169 = scmp.eq.s32.totalorder %s19, 0
      %p170 = por %p168, %p169
      %p171 = scmp.ne.s32.totalorder %s160, %s163
      %p172 = scmp.eq.s32.totalorder %s24, 1
      %p173 = por %p171, %p172
      %p174 = scmp.ne.s32.totalorder %s163, %s164
      %p175 = scmp.eq.s32.totalorder %s24, 0
      %p176 = por %p174, %p175
      %p177 = scmp.ne.s32.totalorder %s163, %s164
      %p178 = scmp.eq.s32.totalorder %s25, 1
      %p179 = por %p177, %p178
      %p181 = scmp.ne.s32.totalorder %s164, %s180
      %p182 = scmp.eq.s32.totalorder %s25, 0
      %p183 = por %p181, %p182
      %p184 = scmp.le.s32.totalorder 1, %s19
      %p185 = scmp.lt.s32.totalorder %s19, 3
      %p186 = pnand %p184, %p185
      %p187 = pneg %p186
      // Predicated region
      $region9: #{tpu_custom_call.1} parent=5 // pred_check
        _
      $region10: #{tpu_custom_call.1} parent=5 // pred_check_branch
        %189 = sbr.rel (%p186) target = $region12
      $region11: #{tpu_custom_call.1} parent=5 // pred_region
        %s190 = ssub.s32 %s19, 1
        // Predicated region
        $region13: #{tpu_custom_call.1} parent=11 // pred_check
          %p191 = pneg %p66
        $region14: #{tpu_custom_call.1} parent=11 // pred_check_branch
          %193 = sbr.rel (%p191) target = $region16
        $region15: #{tpu_custom_call.1} parent=11 // pred_region
          _
        $region16: #{tpu_custom_call.1} parent=11 // pred_fallthru
          _
        // Predicated region
        $region17: #{tpu_custom_call.1} parent=11 // pred_check
          %p194 = pneg %p87
        $region18: #{tpu_custom_call.1} parent=11 // pred_check_branch
          %196 = sbr.rel (%p194) target = $region20
        $region19: #{tpu_custom_call.1} parent=11 // pred_region
          _
        $region20: #{tpu_custom_call.1} parent=11 // pred_fallthru
          _
        // Predicated region
        $region21: #{tpu_custom_call.1} parent=11 // pred_check
          %p197 = pneg %p108
        $region22: #{tpu_custom_call.1} parent=11 // pred_check_branch
          %199 = sbr.rel (%p197) target = $region24
        $region23: #{tpu_custom_call.1} parent=11 // pred_region
          %s201 = ssub.s32 256, 256
          %202 = vsyncadd [#allocation7], %s201
          %s204 = sshll.u32 [#allocation6], 4
          %s205 = int_to_ptr.vmem [resolvable:$true] %s204
          %207 = dma.hbm_to_vmem [thread:$0]  %s3, 256, %s205, [#allocation7]
        $region24: #{tpu_custom_call.1} parent=11 // pred_fallthru
          _
        // Predicated region
        $region25: #{tpu_custom_call.1} parent=11 // pred_check
          %p208 = pneg %p129
        $region26: #{tpu_custom_call.1} parent=11 // pred_check_branch
          %210 = sbr.rel (%p208) target = $region28
        $region27: #{tpu_custom_call.1} parent=11 // pred_region
          _
        $region28: #{tpu_custom_call.1} parent=11 // pred_fallthru
          _
        // Predicated region
        $region29: #{tpu_custom_call.1} parent=11 // pred_check
          %p211 = pneg %p150
        $region30: #{tpu_custom_call.1} parent=11 // pred_check_branch
          %213 = sbr.rel (%p211) target = $region32
        $region31: #{tpu_custom_call.1} parent=11 // pred_region
          _
        $region32: #{tpu_custom_call.1} parent=11 // pred_fallthru
          _
      $region12: #{tpu_custom_call.1} parent=5 // pred_fallthru
        _
      %p214 = scmp.lt.s32.totalorder %s19, 2
      // Predicated region
      $region33: #{tpu_custom_call.1} parent=5 // pred_check
        %p215 = pneg %p214
      $region34: #{tpu_custom_call.1} parent=5 // pred_check_branch
        %217 = sbr.rel (%p215) target = $region36
      $region35: #{tpu_custom_call.1} parent=5 // pred_region
        // Predicated region
        $region37: #{tpu_custom_call.1} parent=35 // pred_check
          %p218 = pneg %p39
        $region38: #{tpu_custom_call.1} parent=35 // pred_check_branch
          %220 = sbr.rel (%p218) target = $region40
        $region39: #{tpu_custom_call.1} parent=35 // pred_region
          %s221 = sand.u32 %s29, 1
          %s222 = scalar_lea.sflag [#allocation4], %s221
          %s223 = sand.u32 %s29, 1
          %s224 = smul.addr %s223, 32
          %s225 = scalar_lea.vmem [#allocation3], %s224
          %s226 = smul.u32 2, %s19
          %s228 = ssub.s32 512, 512
          %229 = vsyncadd %s222, %s228
          %s230 = smul.addr %s226, 128
          %s231 = scalar_lea.hbm %s0, %s230
          %s232 = sshll.u32 %s225, 4
          %s233 = int_to_ptr.vmem [resolvable:$true] %s232
          %238 = dma.hbm_to_vmem [thread:$0]  %s231, 512, %s233, %s222, 512, 256, 16
        $region40: #{tpu_custom_call.1} parent=35 // pred_fallthru
          _
      $region36: #{tpu_custom_call.1} parent=5 // pred_fallthru
        _
      %p239 = scmp.le.s32.totalorder 1, %s19
      %p240 = scmp.lt.s32.totalorder %s19, 3
      %p241 = pnand %p239, %p240
      %p242 = pneg %p241
      // Predicated region
      $region41: #{tpu_custom_call.1} parent=5 // pred_check
        _
      $region42: #{tpu_custom_call.1} parent=5 // pred_check_branch
        %244 = sbr.rel (%p241) target = $region44
      $region43: #{tpu_custom_call.1} parent=5 // pred_region
        %s245 = ssub.s32 %s19, 1
        %s246 = sand.u32 %s32, 1
        %s247 = scalar_lea.sflag [#allocation4], %s246
        %s248 = sand.u32 %s32, 1
        %s249 = smul.addr %s248, 32
        %s250 = scalar_lea.vmem [#allocation3], %s249
        // Predicated region
        $region45: #{tpu_custom_call.1} parent=43 // pred_check
          %p251 = pneg %p45
        $region46: #{tpu_custom_call.1} parent=43 // pred_check_branch
          %253 = sbr.rel (%p251) target = $region48
        $region47: #{tpu_custom_call.1} parent=43 // pred_region
          %254 = dma.done %s247, 512
        $region48: #{tpu_custom_call.1} parent=43 // pred_fallthru
          _
        // Predicated region
        $region49: #{tpu_custom_call.1} parent=43 // pred_check
          %p255 = pneg %p108
        $region50: #{tpu_custom_call.1} parent=43 // pred_check_branch
          %257 = sbr.rel (%p255) target = $region52
        $region51: #{tpu_custom_call.1} parent=43 // pred_region
          %258 = dma.done [#allocation7], 256
        $region52: #{tpu_custom_call.1} parent=43 // pred_fallthru
          _
        %s259 = sand.u32 %s32, 1
        %s260 = scalar_lea.sflag [#allocation4], %s259
        %s261 = sand.u32 %s32, 1
        %s262 = smul.addr %s261, 32
        %s263 = scalar_lea.vmem [#allocation3], %s262
        %p264 = pneg %p45
        %p265 = pneg %p42
        %p266 = pneg %p66
        %p267 = pneg %p63
        %p268 = pneg %p87
        %p269 = pneg %p84
        %p270 = pneg %p108
        %p271 = pneg %p105
        %p272 = pneg %p129
        %p273 = pneg %p126
        %p274 = pneg %p150
        %p275 = pneg %p147
        %p276 = pneg %p176
        %p277 = pneg %p173
        %s278 = sand.u32 %s163, 1
        %s279 = scalar_lea.sflag [#allocation5], %s278
        %s280 = sand.u32 %s163, 1
        %s281 = smul.addr %s280, 8
        %s282 = scalar_lea.vmem [#allocation8], %s281
        %s283 = smul.u32 2, %s24
        %v285 = vld [vmem:[%s250] sm:$0xff]
        %v286 = vld [vmem:[%s250 + $0x8] sm:$0xff]
        %v287 = vld [vmem:[%s250 + $0x10] sm:$0xff]
        %v288 = vld [vmem:[%s250 + $0x18] sm:$0xff]
        %v289 = vlaneseq
        %v290 = vand.u32 %v289, 127
        %v291 = vadd.s32 %v290, 128
        %v292 = vand.u32 %v290, 255
        %v293 = vand.u32 %v291, 255
        %v294 = vand.u32 %v292, 15
        %v295 = vand.u32 %v293, 15
        %vm296 = vcmp.ge.s32.totalorder %v292, 16
        %vm297 = vcmp.ge.s32.totalorder %v293, 16
        %vm298 = vcmp.lt.s32.totalorder %v292, 240
        %vm299 = vcmp.lt.s32.totalorder %v293, 240
        %vm300 = vcmp.ge.s32.totalorder %v294, 1
        %vm301 = vcmp.ge.s32.totalorder %v295, 1
        %vm302 = vcmp.le.s32.totalorder %v294, 14
        %vm303 = vcmp.le.s32.totalorder %v295, 14
        %304 = vrot.lane.b32.xlu0 %v285, 17
        %v305 = vpop.permute.xlu0 %304
        %306 = vrot.lane.b32.xlu0 %v287, 17
        %v307 = vpop.permute.xlu0 %306
        %308 = vrot.lane.b32.xlu0 %v286, 17
        %v309 = vpop.permute.xlu0 %308
        %310 = vrot.lane.b32.xlu0 %v288, 17
        %v311 = vpop.permute.xlu0 %310
        %vm312 = vcmp.lt.s32.totalorder %v290, 17
        %v313 = vsel %vm312, %v305, %v309
        %v314 = vsel %vm312, %v307, %v311
        %v315 = vsel %vm312, %v309, %v305
        %v316 = vsel %vm312, %v311, %v307
        %vm317 = vmand %vm296, %vm300
        %vm318 = vmand %vm297, %vm301
        %v319 = vsel %vm317, %v315, 0.0
        %v320 = vsel %vm318, %v313, 0.0
        %v321 = vsel %vm317, %v316, 0.0
        %v322 = vsel %vm318, %v314, 0.0
        %v323 = vpack.c.bf16 %v321, %v319
        %v324 = vpack.c.bf16 %v322, %v320
        %v327 = vunpack.c.l.b16 %v323
        %v328 = vunpack.c.l.b16 %v324
        %v329 = vunpack.c.h.b16 %v323
        %v330 = vunpack.c.h.b16 %v324
        %v331 = vpack.c.b16 %v328, %v327
        %v332 = vpack.c.b16 %v330, %v329
        %335 = vst [vmem:[#allocation2] sm:$0xff] %v331
        %336 = vst [vmem:[#allocation2 + $0x8] sm:$0xff] %v332
        %337 = vrot.lane.b32.xlu0 %v285, 16
        %v338 = vpop.permute.xlu0 %337
        %339 = vrot.lane.b32.xlu0 %v287, 16
        %v340 = vpop.permute.xlu0 %339
        %341 = vrot.lane.b32.xlu0 %v286, 16
        %v342 = vpop.permute.xlu0 %341
        %343 = vrot.lane.b32.xlu0 %v288, 16
        %v344 = vpop.permute.xlu0 %343
        %vm345 = vcmp.lt.s32.totalorder %v290, 16
        %v346 = vsel %vm345, %v338, %v342
        %v347 = vsel %vm345, %v340, %v344
        %v348 = vsel %vm345, %v342, %v338
        %v349 = vsel %vm345, %v344, %v340
        %v350 = vsel %vm296, %v348, 0.0
        %v351 = vsel %vm297, %v346, 0.0
        %v352 = vsel %vm296, %v349, 0.0
        %v353 = vsel %vm297, %v347, 0.0
        %v354 = vpack.c.bf16 %v352, %v350
        %v355 = vpack.c.bf16 %v353, %v351
        %v358 = vunpack.c.l.b16 %v354
        %v359 = vunpack.c.l.b16 %v355
        %v360 = vunpack.c.h.b16 %v354
        %v361 = vunpack.c.h.b16 %v355
        %v362 = vpack.c.b16 %v359, %v358
        %v363 = vpack.c.b16 %v361, %v360
        %366 = vst [vmem:[#allocation2 + $0x10] sm:$0xff] %v362
        %367 = vst [vmem:[#allocation2 + $0x18] sm:$0xff] %v363
        %368 = vrot.lane.b32.xlu0 %v285, 15
        %v369 = vpop.permute.xlu0 %368
        %370 = vrot.lane.b32.xlu0 %v287, 15
        %v371 = vpop.permute.xlu0 %370
        %372 = vrot.lane.b32.xlu0 %v286, 15
        %v373 = vpop.permute.xlu0 %372
        %374 = vrot.lane.b32.xlu0 %v288, 15
        %v375 = vpop.permute.xlu0 %374
        %vm376 = vcmp.lt.s32.totalorder %v290, 15
        %v377 = vsel %vm376, %v369, %v373
        %v378 = vsel %vm376, %v371, %v375
        %v379 = vsel %vm376, %v373, %v369
        %v380 = vsel %vm376, %v375, %v371
        %vm381 = vmand %vm296, %vm302
        %vm382 = vmand %vm297, %vm303
        %v383 = vsel %vm381, %v379, 0.0
        %v384 = vsel %vm382, %v377, 0.0
        %v385 = vsel %vm381, %v380, 0.0
        %v386 = vsel %vm382, %v378, 0.0
        %v387 = vpack.c.bf16 %v385, %v383
        %v388 = vpack.c.bf16 %v386, %v384
        %v391 = vunpack.c.l.b16 %v387
        %v392 = vunpack.c.l.b16 %v388
        %v393 = vunpack.c.h.b16 %v387
        %v394 = vunpack.c.h.b16 %v388
        %v395 = vpack.c.b16 %v392, %v391
        %v396 = vpack.c.b16 %v394, %v393
        %399 = vst [vmem:[#allocation2 + $0x20] sm:$0xff] %v395
        %400 = vst [vmem:[#allocation2 + $0x28] sm:$0xff] %v396
        %401 = vrot.lane.b32.xlu0 %v285, 1
        %v402 = vpop.permute.xlu0 %401
        %403 = vrot.lane.b32.xlu0 %v287, 1
        %v404 = vpop.permute.xlu0 %403
        %405 = vrot.lane.b32.xlu0 %v286, 1
        %v406 = vpop.permute.xlu0 %405
        %407 = vrot.lane.b32.xlu0 %v288, 1
        %v408 = vpop.permute.xlu0 %407
        %vm409 = vcmp.lt.s32.totalorder %v290, 1
        %v410 = vsel %vm409, %v402, %v406
        %v411 = vsel %vm409, %v404, %v408
        %v412 = vsel %vm409, %v406, %v402
        %v413 = vsel %vm409, %v408, %v404
        %v414 = vsel %vm300, %v412, 0.0
        %v415 = vsel %vm301, %v410, 0.0
        %v416 = vsel %vm300, %v413, 0.0
        %v417 = vsel %vm301, %v411, 0.0
        %v418 = vpack.c.bf16 %v416, %v414
        %v419 = vpack.c.bf16 %v417, %v415
        %v422 = vunpack.c.l.b16 %v418
        %v423 = vunpack.c.l.b16 %v419
        %v424 = vunpack.c.h.b16 %v418
        %v425 = vunpack.c.h.b16 %v419
        %v426 = vpack.c.b16 %v423, %v422
        %v427 = vpack.c.b16 %v425, %v424
        %430 = vst [vmem:[#allocation2 + $0x30] sm:$0xff] %v426
        %431 = vst [vmem:[#allocation2 + $0x38] sm:$0xff] %v427
        %v432 = vpack.c.bf16 %v287, %v285
        %v433 = vpack.c.bf16 %v288, %v286
        %v436 = vunpack.c.l.b16 %v432
        %v437 = vunpack.c.l.b16 %v433
        %v438 = vunpack.c.h.b16 %v432
        %v439 = vunpack.c.h.b16 %v433
        %v440 = vpack.c.b16 %v437, %v436
        %v441 = vpack.c.b16 %v439, %v438
        %444 = vst [vmem:[#allocation2 + $0x40] sm:$0xff] %v440
        %445 = vst [vmem:[#allocation2 + $0x48] sm:$0xff] %v441
        %446 = vrot.lane.b32.xlu0 %v285, 127
        %v447 = vpop.permute.xlu0 %446
        %448 = vrot.lane.b32.xlu0 %v287, 127
        %v449 = vpop.permute.xlu0 %448
        %450 = vrot.lane.b32.xlu0 %v286, 127
        %v451 = vpop.permute.xlu0 %450
        %452 = vrot.lane.b32.xlu0 %v288, 127
        %v453 = vpop.permute.xlu0 %452
        %vm454 = vcmp.lt.s32.totalorder %v290, 127
        %v455 = vsel %vm454, %v447, %v451
        %v456 = vsel %vm454, %v449, %v453
        %v457 = vsel %vm454, %v451, %v447
        %v458 = vsel %vm454, %v453, %v449
        %v459 = vsel %vm302, %v455, 0.0
        %v460 = vsel %vm303, %v457, 0.0
        %v461 = vsel %vm302, %v456, 0.0
        %v462 = vsel %vm303, %v458, 0.0
        %v463 = vpack.c.bf16 %v461, %v459
        %v464 = vpack.c.bf16 %v462, %v460
        %v467 = vunpack.c.l.b16 %v463
        %v468 = vunpack.c.l.b16 %v464
        %v469 = vunpack.c.h.b16 %v463
        %v470 = vunpack.c.h.b16 %v464
        %v471 = vpack.c.b16 %v468, %v467
        %v472 = vpack.c.b16 %v470, %v469
        %475 = vst [vmem:[#allocation2 + $0x50] sm:$0xff] %v471
        %476 = vst [vmem:[#allocation2 + $0x58] sm:$0xff] %v472
        %477 = vrot.lane.b32.xlu0 %v285, 113
        %v478 = vpop.permute.xlu0 %477
        %479 = vrot.lane.b32.xlu0 %v287, 113
        %v480 = vpop.permute.xlu0 %479
        %481 = vrot.lane.b32.xlu0 %v286, 113
        %v482 = vpop.permute.xlu0 %481
        %483 = vrot.lane.b32.xlu0 %v288, 113
        %v484 = vpop.permute.xlu0 %483
        %vm485 = vcmp.lt.s32.totalorder %v290, 113
        %v486 = vsel %vm485, %v478, %v482
        %v487 = vsel %vm485, %v480, %v484
        %v488 = vsel %vm485, %v482, %v478
        %v489 = vsel %vm485, %v484, %v480
        %vm490 = vmand %vm298, %vm300
        %vm491 = vmand %vm299, %vm301
        %v492 = vsel %vm490, %v486, 0.0
        %v493 = vsel %vm491, %v488, 0.0
        %v494 = vsel %vm490, %v487, 0.0
        %v495 = vsel %vm491, %v489, 0.0
        %v496 = vpack.c.bf16 %v494, %v492
        %v497 = vpack.c.bf16 %v495, %v493
        %v500 = vunpack.c.l.b16 %v496
        %v501 = vunpack.c.l.b16 %v497
        %v502 = vunpack.c.h.b16 %v496
        %v503 = vunpack.c.h.b16 %v497
        %v504 = vpack.c.b16 %v501, %v500
        %v505 = vpack.c.b16 %v503, %v502
        %508 = vst [vmem:[#allocation2 + $0x60] sm:$0xff] %v504
        %509 = vst [vmem:[#allocation2 + $0x68] sm:$0xff] %v505
        %510 = vrot.lane.b32.xlu0 %v285, 112
        %v511 = vpop.permute.xlu0 %510
        %512 = vrot.lane.b32.xlu0 %v287, 112
        %v513 = vpop.permute.xlu0 %512
        %514 = vrot.lane.b32.xlu0 %v286, 112
        %v515 = vpop.permute.xlu0 %514
        %516 = vrot.lane.b32.xlu0 %v288, 112
        %v517 = vpop.permute.xlu0 %516
        %vm518 = vcmp.lt.s32.totalorder %v290, 112
        %v519 = vsel %vm518, %v511, %v515
        %v520 = vsel %vm518, %v513, %v517
        %v521 = vsel %vm518, %v515, %v511
        %v522 = vsel %vm518, %v517, %v513
        %v523 = vsel %vm298, %v519, 0.0
        %v524 = vsel %vm299, %v521, 0.0
        %v525 = vsel %vm298, %v520, 0.0
        %v526 = vsel %vm299, %v522, 0.0
        %v527 = vpack.c.bf16 %v525, %v523
        %v528 = vpack.c.bf16 %v526, %v524
        %v531 = vunpack.c.l.b16 %v527
        %v532 = vunpack.c.l.b16 %v528
        %v533 = vunpack.c.h.b16 %v527
        %v534 = vunpack.c.h.b16 %v528
        %v535 = vpack.c.b16 %v532, %v531
        %v536 = vpack.c.b16 %v534, %v533
        %539 = vst [vmem:[#allocation2 + $0x70] sm:$0xff] %v535
        %540 = vst [vmem:[#allocation2 + $0x78] sm:$0xff] %v536
        %541 = vrot.lane.b32.xlu0 %v285, 111
        %v542 = vpop.permute.xlu0 %541
        %543 = vrot.lane.b32.xlu0 %v287, 111
        %v544 = vpop.permute.xlu0 %543
        %545 = vrot.lane.b32.xlu0 %v286, 111
        %v546 = vpop.permute.xlu0 %545
        %547 = vrot.lane.b32.xlu0 %v288, 111
        %v548 = vpop.permute.xlu0 %547
        %vm549 = vcmp.lt.s32.totalorder %v290, 111
        %v550 = vsel %vm549, %v542, %v546
        %v551 = vsel %vm549, %v544, %v548
        %v552 = vsel %vm549, %v546, %v542
        %v553 = vsel %vm549, %v548, %v544
        %vm554 = vmand %vm298, %vm302
        %vm555 = vmand %vm299, %vm303
        %v556 = vsel %vm554, %v550, 0.0
        %v557 = vsel %vm555, %v552, 0.0
        %v558 = vsel %vm554, %v551, 0.0
        %v559 = vsel %vm555, %v553, 0.0
        %v560 = vpack.c.bf16 %v558, %v556
        %v561 = vpack.c.bf16 %v559, %v557
        %v564 = vunpack.c.l.b16 %v560
        %v565 = vunpack.c.l.b16 %v561
        %v566 = vunpack.c.h.b16 %v560
        %v567 = vunpack.c.h.b16 %v561
        %v568 = vpack.c.b16 %v565, %v564
        %v569 = vpack.c.b16 %v567, %v566
        %572 = vst [vmem:[#allocation2 + $0x80] sm:$0xff] %v568
        %573 = vst [vmem:[#allocation2 + $0x88] sm:$0xff] %v569
        %v574 = vld [vmem:[%s1] sm:$0xff]
        %v575 = vld [vmem:[#allocation2] sm:$0xff]
        %v576 = vld [vmem:[#allocation2 + $0x8] sm:$0xff]
        %v577 = vld [vmem:[#allocation2 + $0x10] sm:$0xff]
        %v578 = vld [vmem:[#allocation2 + $0x18] sm:$0xff]
        %v579 = vld [vmem:[#allocation2 + $0x20] sm:$0xff]
        %v580 = vld [vmem:[#allocation2 + $0x28] sm:$0xff]
        %v581 = vld [vmem:[#allocation2 + $0x30] sm:$0xff]
        %v582 = vld [vmem:[#allocation2 + $0x38] sm:$0xff]
        %v583 = vld [vmem:[#allocation2 + $0x40] sm:$0xff]
        %v584 = vld [vmem:[#allocation2 + $0x48] sm:$0xff]
        %v585 = vld [vmem:[#allocation2 + $0x50] sm:$0xff]
        %v586 = vld [vmem:[#allocation2 + $0x58] sm:$0xff]
        %v587 = vld [vmem:[#allocation2 + $0x60] sm:$0xff]
        %v588 = vld [vmem:[#allocation2 + $0x68] sm:$0xff]
        %v589 = vld [vmem:[#allocation2 + $0x70] sm:$0xff]
        %v590 = vld [vmem:[#allocation2 + $0x78] sm:$0xff]
        %v591 = vld [vmem:[#allocation2 + $0x80] sm:$0xff]
        %v592 = vld [vmem:[#allocation2 + $0x88] sm:$0xff]
        %v593 = vld [vmem:[%s2] sm:$0xff]
        %595 = vset.pattern.permute.xlu0 0
        %596 = vperm.xlu0 %595, %v593
        %v597 = vpop.permute.xlu0 %596
        %v600 = vunpack.c.l.b16 %v574
        %v601 = vunpack.c.h.b16 %v574
        %v602 = vpack.c.b16 %v600, %v600
        %v603 = vpack.c.b16 %v601, %v601
        %v623 = vunpack.c.l.b16 %v575
        %v624 = vunpack.c.h.b16 %v575
        %v625 = vunpack.c.l.b16 %v576
        %v626 = vunpack.c.h.b16 %v576
        %v627 = vunpack.c.l.b16 %v577
        %v628 = vunpack.c.h.b16 %v577
        %v629 = vunpack.c.l.b16 %v578
        %v630 = vunpack.c.h.b16 %v578
        %v631 = vunpack.c.l.b16 %v579
        %v632 = vunpack.c.h.b16 %v579
        %v633 = vunpack.c.l.b16 %v580
        %v634 = vunpack.c.h.b16 %v580
        %v635 = vunpack.c.l.b16 %v581
        %v636 = vunpack.c.h.b16 %v581
        %v637 = vunpack.c.l.b16 %v582
        %v638 = vunpack.c.h.b16 %v582
        %v639 = vunpack.c.l.b16 %v583
        %v640 = vunpack.c.h.b16 %v583
        %v641 = vunpack.c.l.b16 %v584
        %v642 = vunpack.c.h.b16 %v584
        %v643 = vunpack.c.l.b16 %v585
        %v644 = vunpack.c.h.b16 %v585
        %v645 = vunpack.c.l.b16 %v586
        %v646 = vunpack.c.h.b16 %v586
        %v647 = vunpack.c.l.b16 %v587
        %v648 = vunpack.c.h.b16 %v587
        %v649 = vunpack.c.l.b16 %v588
        %v650 = vunpack.c.h.b16 %v588
        %v651 = vunpack.c.l.b16 %v589
        %v652 = vunpack.c.h.b16 %v589
        %v653 = vunpack.c.l.b16 %v590
        %v654 = vunpack.c.h.b16 %v590
        %v655 = vunpack.c.l.b16 %v591
        %v656 = vunpack.c.h.b16 %v591
        %v657 = vunpack.c.l.b16 %v592
        %v658 = vunpack.c.h.b16 %v592
        %v659 = vpack.c.b16 %v625, %v623
        %v660 = vpack.c.b16 %v626, %v624
        %v661 = vpack.c.b16 %v629, %v627
        %v662 = vpack.c.b16 %v630, %v628
        %v663 = vpack.c.b16 %v633, %v631
        %v664 = vpack.c.b16 %v634, %v632
        %v665 = vpack.c.b16 %v637, %v635
        %v666 = vpack.c.b16 %v638, %v636
        %v667 = vpack.c.b16 %v641, %v639
        %v668 = vpack.c.b16 %v642, %v640
        %v669 = vpack.c.b16 %v645, %v643
        %v670 = vpack.c.b16 %v646, %v644
        %v671 = vpack.c.b16 %v649, %v647
        %v672 = vpack.c.b16 %v650, %v648
        %v673 = vpack.c.b16 %v653, %v651
        %v674 = vpack.c.b16 %v654, %v652
        %v675 = vpack.c.b16 %v657, %v655
        %v676 = vpack.c.b16 %v658, %v656
        %vm695 = vcmask 130048
        %v697 = vsel %vm695, %v603, 0
        %699 = vmatprep.subr.bf16.mxu0 %v674
        %700 = vmatpush1.bf16.msra.mxu0 %v673
        %701 = vmatprep.subr.bf16.mxu0 %v672
        %702 = vmatpush1.bf16.msra.mxu0 %v671
        %703 = vmatprep.subr.bf16.mxu0 %v670
        %704 = vmatpush1.bf16.msra.mxu0 %v669
        %705 = vmatprep.subr.bf16.mxu0 %v668
        %706 = vmatpush1.bf16.msra.mxu0 %v667
        %707 = vmatprep.subr.bf16.mxu0 %v666
        %708 = vmatpush1.bf16.msra.mxu0 %v665
        %709 = vmatprep.subr.bf16.mxu0 %v664
        %710 = vmatpush1.bf16.msra.mxu0 %v663
        %711 = vmatprep.subr.bf16.mxu0 %v662
        %712 = vmatpush1.bf16.msra.mxu0 %v661
        %713 = vmatprep.subr.bf16.mxu0 %v660
        %714 = vmatpush1.bf16.msra.mxu0 %v659
        %715 = vmatprep.subr.bf16.mxu0 0
        %716 = vmatpush2.bf16.msra.mxu0 0
        %717 = vmatprep.subr.bf16.mxu0 0
        %718 = vmatpush2.bf16.msra.mxu0 0
        %719 = vmatprep.subr.bf16.mxu0 0
        %720 = vmatpush2.bf16.msra.mxu0 0
        %721 = vmatprep.subr.bf16.mxu0 0
        %722 = vmatpush2.bf16.msra.mxu0 0
        %723 = vmatprep.subr.bf16.mxu0 0
        %724 = vmatpush2.bf16.msra.mxu0 0
        %725 = vmatprep.subr.bf16.mxu0 0
        %726 = vmatpush2.bf16.msra.mxu0 0
        %727 = vmatprep.subr.bf16.mxu0 0
        %728 = vmatpush2.bf16.msra.mxu0 0
        %729 = vmatprep.subr.bf16.mxu0 %v676
        %730 = vmatpush2.bf16.msra.mxu0 %v675
        %731 = vmatprep.mubr.bf16.mxu0 %v697
        %732 = vmatmul.mubr.bf16.gmra.mxu0 %v602
        %v733 = vpop.f32.mrf.mxu0
        %v734 = vadd.f32 %v597, %v733
        %v735 = vpop.f32.mrf.mxu0
        %v736 = vadd.f32 %v597, %v735
        %v737 = vpop.f32.mrf.mxu0
        %v738 = vpop.f32.mrf.mxu0
        %739 = vdwg.mxu0
        %v740 = vmax.f32 %v734, 0.0
        %v741 = vmax.f32 %v736, 0.0
        %v742 = vld [vmem:[#allocation6] sm:$0xff]
        %v743 = vld [vmem:[#allocation6 + $0x8] sm:$0xff]
        %744 = vmatprep.subr.mxu0 0.0
        %745 = vmatpush1.xpose.msra.mxu0 0.0
        %746 = vmatprep.subr.mxu0 0.0
        %747 = vmatpush1.xpose.msra.mxu0 0.0
        %748 = vmatprep.subr.mxu0 0.0
        %749 = vmatpush1.xpose.msra.mxu0 0.0
        %750 = vmatprep.subr.mxu0 0.0
        %751 = vmatpush1.xpose.msra.mxu0 0.0
        %752 = vmatprep.subr.mxu0 0.0
        %753 = vmatpush1.xpose.msra.mxu0 0.0
        %754 = vmatprep.subr.mxu0 0.0
        %755 = vmatpush1.xpose.msra.mxu0 0.0
        %756 = vmatprep.subr.mxu0 0.0
        %757 = vmatpush1.xpose.msra.mxu0 0.0
        %758 = vmatprep.subr.mxu0 0.0
        %759 = vmatpush1.xpose.msra.mxu0 0.0
        %760 = vmatprep.subr.mxu0 0.0
        %761 = vmatpush1.xpose.msra.mxu0 0.0
        %762 = vmatprep.subr.mxu0 0.0
        %763 = vmatpush1.xpose.msra.mxu0 0.0
        %764 = vmatprep.subr.mxu0 0.0
        %765 = vmatpush1.xpose.msra.mxu0 0.0
        %766 = vmatprep.subr.mxu0 0.0
        %767 = vmatpush1.xpose.msra.mxu0 0.0
        %768 = vmatprep.subr.mxu0 0.0
        %769 = vmatpush1.xpose.msra.mxu0 0.0
        %770 = vmatprep.subr.mxu0 0.0
        %771 = vmatpush1.xpose.msra.mxu0 0.0
        %772 = vmatprep.subr.mxu0 0.0
        %773 = vmatpush1.xpose.msra.mxu0 0.0
        %774 = vmatprep.subr.mxu0 %v741
        %775 = vmatpush1.xpose.msra.mxu0 %v740
        %776 = vmatprep.subr.mxu0 0.0
        %777 = vmatpush2.xpose.msra.mxu0 0.0
        %778 = vmatprep.subr.mxu0 0.0
        %779 = vmatpush2.xpose.msra.mxu0 0.0
        %780 = vmatprep.subr.mxu0 0.0
        %781 = vmatpush2.xpose.msra.mxu0 0.0
        %782 = vmatprep.subr.mxu0 0.0
        %783 = vmatpush2.xpose.msra.mxu0 0.0
        %784 = vmatprep.subr.mxu0 0.0
        %785 = vmatpush2.xpose.msra.mxu0 0.0
        %786 = vmatprep.subr.mxu0 0.0
        %787 = vmatpush2.xpose.msra.mxu0 0.0
        %788 = vmatprep.subr.mxu0 0.0
        %789 = vmatpush2.xpose.msra.mxu0 0.0
        %790 = vmatprep.subr.mxu0 0.0
        %791 = vmatpush2.xpose.msra.mxu0 0.0
        %792 = vmatprep.subr.mxu0 0.0
        %793 = vmatpush2.xpose.msra.mxu0 0.0
        %794 = vmatprep.subr.mxu0 0.0
        %795 = vmatpush2.xpose.msra.mxu0 0.0
        %796 = vmatprep.subr.mxu0 0.0
        %797 = vmatpush2.xpose.msra.mxu0 0.0
        %798 = vmatprep.subr.mxu0 0.0
        %799 = vmatpush2.xpose.msra.mxu0 0.0
        %800 = vmatprep.subr.mxu0 0.0
        %801 = vmatpush2.xpose.msra.mxu0 0.0
        %802 = vmatprep.subr.mxu0 0.0
        %803 = vmatpush2.xpose.msra.mxu0 0.0
        %804 = vmatprep.subr.mxu0 0.0
        %805 = vmatpush2.xpose.msra.mxu0 0.0
        %806 = vmatprep.subr.mxu0 0.0
        %807 = vmatpush2.xpose.msra.mxu0 0.0
        %808 = vmatprep.mubr.f32.mxu0 %v743
        %809 = vmatmul.mubr.f32.gmra.mxu0 %v742
        %v810 = vpop.f32.mrf.mxu0
        %v811 = vadd.f32 0.0, %v810
        %v812 = vpop.f32.mrf.mxu0
        %813 = vdwg.mxu0
        %v814 = vld [vmem:[%s4] sm:$0xff]
        %v815 = vld [vmem:[%s5] sm:$0x1]
        %v817 = vlaneseq
        %v818 = vshrl.u32 %v817, 7
        %v819 = vsub.s32 0, %v818
        %v820 = vrot.slane %v815, %v819
        %vm822 = vcmask 64512
        %v824 = vsel %vm822, %v811, 0
        %826 = vmatprep.subr.mxu0 0.0
        %827 = vmatpush1.msra.mxu0 0.0
        %828 = vmatprep.subr.mxu0 0.0
        %829 = vmatpush1.msra.mxu0 0.0
        %830 = vmatprep.subr.mxu0 0.0
        %831 = vmatpush1.msra.mxu0 0.0
        %832 = vmatprep.subr.mxu0 0.0
        %833 = vmatpush1.msra.mxu0 0.0
        %834 = vmatprep.subr.mxu0 0.0
        %835 = vmatpush1.msra.mxu0 0.0
        %836 = vmatprep.subr.mxu0 0.0
        %837 = vmatpush1.msra.mxu0 0.0
        %838 = vmatprep.subr.mxu0 0.0
        %839 = vmatpush1.msra.mxu0 0.0
        %840 = vmatprep.subr.mxu0 0.0
        %841 = vmatpush1.msra.mxu0 0.0
        %842 = vmatprep.subr.mxu0 0.0
        %843 = vmatpush1.msra.mxu0 0.0
        %844 = vmatprep.subr.mxu0 0.0
        %845 = vmatpush1.msra.mxu0 0.0
        %846 = vmatprep.subr.mxu0 0.0
        %847 = vmatpush1.msra.mxu0 0.0
        %848 = vmatprep.subr.mxu0 0.0
        %849 = vmatpush1.msra.mxu0 0.0
        %850 = vmatprep.subr.mxu0 0.0
        %851 = vmatpush1.msra.mxu0 0.0
        %852 = vmatprep.subr.mxu0 0.0
        %853 = vmatpush1.msra.mxu0 0.0
        %854 = vmatprep.subr.mxu0 0.0
        %855 = vmatpush1.msra.mxu0 0.0
        %856 = vmatprep.subr.mxu0 0.0
        %857 = vmatpush1.msra.mxu0 %v814
        %858 = vmatprep.subr.mxu0 0.0
        %859 = vmatpush2.msra.mxu0 0.0
        %860 = vmatprep.subr.mxu0 0.0
        %861 = vmatpush2.msra.mxu0 0.0
        %862 = vmatprep.subr.mxu0 0.0
        %863 = vmatpush2.msra.mxu0 0.0
        %864 = vmatprep.subr.mxu0 0.0
        %865 = vmatpush2.msra.mxu0 0.0
        %866 = vmatprep.subr.mxu0 0.0
        %867 = vmatpush2.msra.mxu0 0.0
        %868 = vmatprep.subr.mxu0 0.0
        %869 = vmatpush2.msra.mxu0 0.0
        %870 = vmatprep.subr.mxu0 0.0
        %871 = vmatpush2.msra.mxu0 0.0
        %872 = vmatprep.subr.mxu0 0.0
        %873 = vmatpush2.msra.mxu0 0.0
        %874 = vmatprep.subr.mxu0 0.0
        %875 = vmatpush2.msra.mxu0 0.0
        %876 = vmatprep.subr.mxu0 0.0
        %877 = vmatpush2.msra.mxu0 0.0
        %878 = vmatprep.subr.mxu0 0.0
        %879 = vmatpush2.msra.mxu0 0.0
        %880 = vmatprep.subr.mxu0 0.0
        %881 = vmatpush2.msra.mxu0 0.0
        %882 = vmatprep.subr.mxu0 0.0
        %883 = vmatpush2.msra.mxu0 0.0
        %884 = vmatprep.subr.mxu0 0.0
        %885 = vmatpush2.msra.mxu0 0.0
        %886 = vmatprep.subr.mxu0 0.0
        %887 = vmatpush2.msra.mxu0 0.0
        %888 = vmatprep.subr.mxu0 0.0
        %889 = vmatpush2.msra.mxu0 0.0
        %890 = vmatprep.mubr.f32.mxu0 0.0
        %891 = vmatmul.mubr.f32.gmra.mxu0 %v824
        %v892 = vpop.f32.mrf.mxu0
        %v893 = vadd.f32 %v820, %v892
        %v894 = vpop.f32.mrf.mxu0
        %895 = vdwg.mxu0
        %896 = vst [vmem:[%s282] sm:$0xff] %v893
        %s897 = sand.u32 %s163, 1
        %s898 = scalar_lea.sflag [#allocation5], %s897
        %s899 = sand.u32 %s163, 1
        %s900 = smul.addr %s899, 8
        %s901 = scalar_lea.vmem [#allocation8], %s900
        // Predicated region
        $region53: #{tpu_custom_call.1} parent=43 // pred_check
          %p902 = pneg %p173
        $region54: #{tpu_custom_call.1} parent=43 // pred_check_branch
          %904 = sbr.rel (%p902) target = $region56
        $region55: #{tpu_custom_call.1} parent=43 // pred_region
          %s906 = ssub.s32 128, 128
          %907 = vsyncadd %s898, %s906
          %s908 = smul.addr %s24, 128
          %s909 = scalar_lea.hbm %s6, %s908
          %s911 = sshll.u32 %s901, 4
          %s912 = int_to_ptr.vmem [resolvable:$true] %s911
          %914 = dma.vmem_to_hbm [thread:$0]  %s912, 128, %s909, %s898
        $region56: #{tpu_custom_call.1} parent=43 // pred_fallthru
          _
      $region44: #{tpu_custom_call.1} parent=5 // pred_fallthru
        _
      %p915 = scmp.le.s32.totalorder 2, %s19
      // Predicated region
      $region57: #{tpu_custom_call.1} parent=5 // pred_check
        %p916 = pneg %p915
      $region58: #{tpu_custom_call.1} parent=5 // pred_check_branch
        %918 = sbr.rel (%p916) target = $region60
      $region59: #{tpu_custom_call.1} parent=5 // pred_region
        %s919 = ssub.s32 %s19, 2
        // Predicated region
        $region61: #{tpu_custom_call.1} parent=59 // pred_check
          %p920 = pneg %p179
        $region62: #{tpu_custom_call.1} parent=59 // pred_check_branch
          %922 = sbr.rel (%p920) target = $region64
        $region63: #{tpu_custom_call.1} parent=59 // pred_region
          %s923 = sand.u32 %s164, 1
          %s924 = scalar_lea.sflag [#allocation5], %s923
          %s925 = sand.u32 %s164, 1
          %s926 = smul.addr %s925, 8
          %s927 = scalar_lea.vmem [#allocation8], %s926
          %928 = dma.done %s924, 128
        $region64: #{tpu_custom_call.1} parent=59 // pred_fallthru
          _
      $region60: #{tpu_custom_call.1} parent=5 // pred_fallthru
        _
    $region6: #{tpu_custom_call.1} parent=1 // loop_footer
      %s23 = sadd.s32 1, %s19
    $region7: #{tpu_custom_call.1} parent=1 // loop_footer_branch
      %18 = sbr.rel target = $region3
    $region8: #{tpu_custom_call.1} parent=1 // loop_exit
      _
    %929 = vsyncpa [#allocation4], 1
    %s930 = scalar_lea.sflag [#allocation4], 1
    %931 = vsyncpa %s930, 1
    %932 = vsyncpa [#allocation7], 1
    %933 = vsyncpa [#allocation5], 1
    %s934 = scalar_lea.sflag [#allocation5], 1
    %935 = vsyncpa %s934, 1

</llo_original>
